<compile_context>
chip_gen: v7x
topology: tpu7x:2x2x1
jax: 0.10.0
libtpu: 0.0.40
codegen_flags: <defaults>
</compile_context>

<pallas_src>
import functools

import jax
import jax.numpy as jnp
import numpy as np
from jax import lax
from jax.experimental import pallas as pl
from jax.experimental.pallas import tpu as pltpu


def _round_up(x, m):
    return ((x + m - 1) // m) * m


def _device_profile():
    """Per-generation dtype / VMEM-budget choices (conservative for unknown chips)."""
    try:
        kind = jax.devices()[0].device_kind.lower()
    except Exception:
        kind = ""
    mib = 1024 * 1024
    if any(tag in kind for tag in ("v2", "v3", "v4", "v5")):
        # No bf16 VPU/EUP (incl. v5p) -> tanh in f32; 128 MiB physical VMEM, 1 TC.
        return dict(tanh_dtype=jnp.float32, vmem_limit=64 * mib,
                    compute_budget=40 * mib, two_cores=False)
    if "v6" in kind:
        # bf16 VPU/EUP, 128 MiB VMEM, 1 TC.
        return dict(tanh_dtype=jnp.bfloat16, vmem_limit=96 * mib,
                    compute_budget=56 * mib, two_cores=False)
    # v7x (and unknown future chips): bf16 VPU, only 64 MiB VMEM, 2 TCs/chip.
    return dict(tanh_dtype=jnp.bfloat16, vmem_limit=48 * mib,
                compute_budget=24 * mib, two_cores=True)


def _additive_attention_kernel(kmax_ref, vl_ref, qp_ref, kpt_ref, v_ref, wv_ref,
                               o_ref, m_sc, l_sc, acc_sc,
                               *, tanh_dtype, tk, n_kv):
    """One grid step = (batch block b) x (key tile k), online softmax over k."""
    b = pl.program_id(0)
    k = pl.program_id(1)
    n_k = pl.num_programs(1)

    @pl.when(k == 0)
    def _init():
        m_sc[...] = jnp.full_like(m_sc, -jnp.inf)
        l_sc[...] = jnp.zeros_like(l_sc)
        acc_sc[...] = jnp.zeros_like(acc_sc)

    # Skip key tiles entirely beyond this block's max valid length (SMEM scalar).
    # Tile 0 is always processed (kmax >= 1 by construction), so l_sc stays > 0.
    @pl.when(k * tk < kmax_ref[b])
    def _tile():
        # qp: (Bt, n_q, H, 1) — H on sublanes, keys broadcast along lanes.
        # kpt: (Bt, H, Tk)    — keys-last, lane-dense (Tk multiple of 128).
        qp = qp_ref[...].astype(tanh_dtype)
        kpt = kpt_ref[...].astype(tanh_dtype)
        feats = jnp.tanh(qp + kpt[:, None, :, :])        # (Bt, n_q, H, Tk)

        # score[b,q,t] = <tanh(.), w_v>: VPU multiply + sublane reduce over H,
        # accumulated in f32 (no separately-kept f32 copy of the feature map).
        wv = wv_ref[...].astype(tanh_dtype).reshape(1, 1, -1, 1)   # (1,1,H,1)
        scores = jnp.sum(feats * wv, axis=2, dtype=jnp.float32)    # (Bt, n_q, Tk)

        bt, n_q, _ = scores.shape
        col = k * tk + lax.broadcasted_iota(jnp.int32, (bt, n_q, tk), 2)
        # masked_softmax: key position dropped when col >= valid_len (reference value).
        scores = jnp.where(col < vl_ref[...], scores, jnp.float32(-1e20))
        # lane-padding columns (col >= n_kv) must get exactly-zero weight.
        scores = jnp.where(col < n_kv, scores, jnp.float32(-3e38))

        # Online (flash-style) softmax update.
        m_prev = m_sc[...]
        m_new = jnp.maximum(m_prev, jnp.max(scores, axis=-1, keepdims=True))
        alpha = jnp.exp(m_prev - m_new)
        p = jnp.exp(scores - m_new)                                 # (Bt, n_q, Tk) f32
        l_sc[...] = alpha * l_sc[...] + jnp.sum(p, axis=-1, keepdims=True)
        # AV update: bf16 MXU matmul with f32 accumulation (hidden under the
        # EUP-bound tanh; for tiny n_q a VPU MAC would also work).
        acc_sc[...] = alpha * acc_sc[...] + jnp.einsum(
            'bqt,btd->bqd', p.astype(v_ref.dtype), v_ref[...],
            preferred_element_type=jnp.float32)
        m_sc[...] = m_new

    @pl.when(k == n_k - 1)
    def _finalize():
        inv_l = pl.reciprocal(l_sc[...], approx=True)               # EUP slot
        o_ref[...] = (acc_sc[...] * inv_l).astype(o_ref.dtype)


def additive_attention(Q, K, V, Wq, Wk, Wv, valid_lens=None, *,
                       block_batch=8, tanh_dtype=None):
    """Pallas-backed forward pass of AdditiveAttention (eval mode)."""
    B, n_q, q_size = Q.shape
    _, n_kv, k_size = K.shape
    _, _, v_size = V.shape
    H = Wq.shape[1]

    prof = _device_profile()
    if tanh_dtype is None:
        tanh_dtype = prof["tanh_dtype"]
    dt_bytes = jnp.dtype(tanh_dtype).itemsize
    out_dtype = Q.dtype
    out_bytes = jnp.dtype(out_dtype).itemsize

    # --- Projections once over the whole batch (f32 MXU accumulate, shipped narrow).
    QP = jnp.einsum('bqf,fh->bqh', Q, Wq,
                    preferred_element_type=jnp.float32).astype(tanh_dtype)
    KP = jnp.einsum('bkf,fh->bkh', K, Wk,
                    preferred_element_type=jnp.float32).astype(tanh_dtype)
    QP4 = QP[..., None]                      # (B, n_q, H, 1): H on sublanes in-kernel
    KPT = jnp.swapaxes(KP, 1, 2)             # (B, H, n_kv): keys-last (lane-dense tiles)

    # --- valid_lens -> dense (B, n_q) int32 (None / 1-D / 2-D accepted).
    if valid_lens is None:
        vl2 = jnp.full((B, n_q), n_kv, dtype=jnp.int32)
    elif valid_lens.ndim == 1:
        vl2 = jnp.broadcast_to(valid_lens.astype(jnp.int32)[:, None], (B, n_q))
    elif valid_lens.ndim == 2:
        assert valid_lens.shape == (B, n_q)
        vl2 = valid_lens.astype(jnp.int32)
    else:
        raise ValueError("wrong valid_lens")

    # --- lane-dense value/output feature dim.
    Vp_dim = _round_up(max(v_size, 1), 128)

    # --- choose batch block Bt and key tile TK to fit the per-step VMEM budget.
    Bt = max(1, min(block_batch, B))
    if prof["two_cores"] and B > 1:
        # v7x: make sure the "parallel" batch axis has >= 2 steps so both TCs work.
        Bt = min(Bt, max(1, (B + 1) // 2))
    TK = min(512, _round_up(n_kv, 128))

    def step_bytes(bt, tk):
        # double-buffered inputs/output
        io = 2 * bt * (n_q * H * dt_bytes            # QP4 tile
                       + H * tk * dt_bytes           # KPT tile
                       + tk * Vp_dim * 2             # V tile (bf16)
                       + n_q * 4                     # valid lens
                       + n_q * Vp_dim * out_bytes)   # output tile
        scratch = bt * n_q * (Vp_dim + 2) * 4
        # feature-map tile + products (+ f32 conversion headroom) + score temps + acc temp
        interm = bt * n_q * tk * (5 * H * dt_bytes + 4 * 4) + bt * n_q * Vp_dim * 4
        return io + scratch + interm

    budget = prof["compute_budget"]
    while Bt > 1 and step_bytes(Bt, TK) > budget:
        Bt = (Bt + 1) // 2
    while TK > 128 and step_bytes(Bt, TK) > budget:
        TK -= 128

    n_kv_pad = _round_up(n_kv, TK)
    B_pad = _round_up(B, Bt)
    n_b_blocks = B_pad // Bt
    n_k_tiles = n_kv_pad // TK

    # --- pad batch / key / value-feature axes.
    QP4 = jnp.pad(QP4, ((0, B_pad - B), (0, 0), (0, 0), (0, 0)))
    KPT = jnp.pad(KPT, ((0, B_pad - B), (0, 0), (0, n_kv_pad - n_kv)))
    Vp = jnp.pad(V.astype(jnp.bfloat16),
                 ((0, B_pad - B), (0, n_kv_pad - n_kv), (0, Vp_dim - v_size)))
    # Padded batch rows get valid_len=1 (finite, cheap, sliced off afterwards).
    vl2 = jnp.pad(vl2, ((0, B_pad - B), (0, 0)), constant_values=1)
    vl3 = vl2[..., None]

    # Per-batch-block max "effective" valid length for key-tile skipping.
    # valid_len == 0 means "softmax over everything" in the reference -> force all tiles.
    eff = jnp.where(vl2 > 0, vl2, n_kv)
    kmax = jnp.max(eff.reshape(n_b_blocks, Bt * n_q), axis=1).astype(jnp.int32)

    WvCol = Wv.astype(jnp.float32).reshape(H, 1)     # (H, 1): H on sublanes

    kernel = functools.partial(_additive_attention_kernel,
                               tanh_dtype=tanh_dtype, tk=TK, n_kv=n_kv)

    out = pl.pallas_call(
        kernel,
        out_shape=jax.ShapeDtypeStruct((B_pad, n_q, Vp_dim), out_dtype),
        grid_spec=pltpu.PrefetchScalarGridSpec(
            num_scalar_prefetch=1,
            grid=(n_b_blocks, n_k_tiles),
            in_specs=[
                pl.BlockSpec((Bt, n_q, 1), lambda b, k, kmax: (b, 0, 0)),        # valid lens
                pl.BlockSpec((Bt, n_q, H, 1), lambda b, k, kmax: (b, 0, 0, 0)),  # projected Q
                pl.BlockSpec((Bt, H, TK), lambda b, k, kmax: (b, 0, k)),         # projected K^T tile
                pl.BlockSpec((Bt, TK, Vp_dim), lambda b, k, kmax: (b, k, 0)),    # padded V tile (bf16)
                pl.BlockSpec((H, 1), lambda b, k, kmax: (0, 0)),                 # w_v
            ],
            out_specs=pl.BlockSpec((Bt, n_q, Vp_dim), lambda b, k, kmax: (b, 0, 0)),
            scratch_shapes=[
                pltpu.VMEM((Bt, n_q, 1), jnp.float32),       # running max m
                pltpu.VMEM((Bt, n_q, 1), jnp.float32),       # running denom l
                pltpu.VMEM((Bt, n_q, Vp_dim), jnp.float32),  # f32 AV accumulator
            ]),
        compiler_params=pltpu.CompilerParams(
            dimension_semantics=("parallel", "arbitrary"),
            vmem_limit_bytes=prof["vmem_limit"]),
    )(kmax, vl3, QP4, KPT, Vp, WvCol)

    return out[:B, :, :v_size]


def additive_attention_ref(Q, K, V, Wq, Wk, Wv, valid_lens=None):
    """Pure-JAX reference mirroring the PyTorch module."""
    qp = Q @ Wq
    kp = K @ Wk
    feats = jnp.tanh(qp[:, :, None, :] + kp[:, None, :, :])
    scores = jnp.squeeze(feats @ Wv, -1)                              # (B, n_q, n_kv)
    B, n_q, n_kv = scores.shape
    if valid_lens is not None:
        if valid_lens.ndim == 1:
            vl = jnp.broadcast_to(valid_lens[:, None], (B, n_q))
        else:
            vl = valid_lens
        mask = jnp.arange(n_kv)[None, None, :] < vl[:, :, None]
        scores = jnp.where(mask, scores, -1e20)
    w = jax.nn.softmax(scores, axis=-1)
    return w @ V


if __name__ == "__main__":
    # Small, module-consistent shapes.
    B, n_q, n_kv = 2, 8, 10
    q_size, k_size, v_size, H = 12, 16, 20, 32

    key = jax.random.PRNGKey(0)
    kq, kk, kv, kwq, kwk, kwv = jax.random.split(key, 6)

    Q = jax.random.normal(kq, (B, n_q, q_size), dtype=jnp.float32)
    K = jax.random.normal(kk, (B, n_kv, k_size), dtype=jnp.float32)
    V = jax.random.normal(kv, (B, n_kv, v_size), dtype=jnp.float32)

    # Deterministic parameter init (LazyLinear-style uniform), stored as (in, out).
    def lin_init(k, fan_in, fan_out):
        bound = 1.0 / np.sqrt(fan_in)
        return jax.random.uniform(k, (fan_in, fan_out), jnp.float32, -bound, bound)

    Wq = lin_init(kwq, q_size, H)
    Wk = lin_init(kwk, k_size, H)
    Wv = lin_init(kwv, H, 1)

    valid_lens = jnp.array([4, 10], dtype=jnp.int32)   # shape (B,)

    ref = additive_attention_ref(Q, K, V, Wq, Wk, Wv, valid_lens)

    # f32-tanh path: tight-ish check (tolerance covers bf16 V / bf16 AV weights
    # and the approx reciprocal in the softmax denominator).
    out_f32 = additive_attention(Q, K, V, Wq, Wk, Wv, valid_lens,
                                 tanh_dtype=jnp.float32)
    out_f32 = jax.block_until_ready(out_f32)
    np.testing.assert_allclose(np.asarray(out_f32), np.asarray(ref),
                               rtol=2e-2, atol=2e-2)

    # No-mask path (exercises valid_lens=None and full-length key tiles).
    ref_none = additive_attention_ref(Q, K, V, Wq, Wk, Wv, None)
    out_none = additive_attention(Q, K, V, Wq, Wk, Wv, None,
                                  tanh_dtype=jnp.float32)
    out_none = jax.block_until_ready(out_none)
    np.testing.assert_allclose(np.asarray(out_none), np.asarray(ref_none),
                               rtol=2e-2, atol=2e-2)

    # Auto path (bf16 tanh on v6e/v7x, f32 elsewhere): sanity check of the
    # reduced-precision feature map.
    out_auto = additive_attention(Q, K, V, Wq, Wk, Wv, valid_lens)
    out_auto = jax.block_until_ready(out_auto)
    np.testing.assert_allclose(np.asarray(out_auto), np.asarray(ref),
                               rtol=1e-1, atol=1e-1)

    print("KERNEL_OK")
</pallas_src>

<mosaic_0001>
module attributes {stable_mosaic.version = 11 : i64} {
  func.func @_additive_attention_kernel(%arg0: i32, %arg1: i32, %arg2: memref<2xi32, #tpu.memory_space<smem>>, %arg3: memref<1x8x1xi32, #tpu.memory_space<vmem>>, %arg4: memref<1x8x32x1xf32, #tpu.memory_space<vmem>>, %arg5: memref<1x32x128xf32, #tpu.memory_space<vmem>>, %arg6: memref<1x128x128xbf16, #tpu.memory_space<vmem>>, %arg7: memref<32x1xf32, #tpu.memory_space<vmem>>, %arg8: memref<1x8x128xf32, #tpu.memory_space<vmem>>, %arg9: memref<1x8x1xf32, #tpu.memory_space<vmem>>, %arg10: memref<1x8x1xf32, #tpu.memory_space<vmem>>, %arg11: memref<1x8x128xf32, #tpu.memory_space<vmem>>) attributes {dimension_semantics = [#tpu.dimension_semantics<parallel>, #tpu.dimension_semantics<arbitrary>], iteration_bounds = array<i64: 2, 1>, scalar_prefetch = 1 : i64, scratch_operands = 3 : i64, tpu.core_type = #tpu.core_type<tc>, window_params = [{transform_indices = @transform_0, window_bounds = array<i64: 1, 8, 1>}, {transform_indices = @transform_1, window_bounds = array<i64: 1, 8, 32, 1>}, {transform_indices = @transform_2, window_bounds = array<i64: 1, 32, 128>}, {transform_indices = @transform_3, window_bounds = array<i64: 1, 128, 128>}, {pipeline_mode = #tpu.pipeline_mode<synchronous>, transform_indices = @transform_4, window_bounds = array<i64: 32, 1>}, {transform_indices = @transform_5, window_bounds = array<i64: 1, 8, 128>}]} {
    %c0_i32 = arith.constant 0 : i32
    %0 = arith.cmpi eq, %arg1, %c0_i32 : i32
    %1 = arith.extui %0 : i1 to i32
    %c0_i32_0 = arith.constant 0 : i32
    %2 = arith.cmpi ne, %1, %c0_i32_0 : i32
    scf.if %2 {
      %cst = arith.constant 0xFF800000 : f32
      %12 = vector.broadcast %cst : f32 to vector<1x8x1xf32>
      %c0 = arith.constant 0 : index
      %c0_4 = arith.constant 0 : index
      %c0_5 = arith.constant 0 : index
      %13 = vector.load %arg9[%c0, %c0_4, %c0_5] : memref<1x8x1xf32, #tpu.memory_space<vmem>>, vector<1x8x1xf32>
      tpu.vector_store %arg9[%c0, %c0_4, %c0_5], %12 {strides = array<i32>} : memref<1x8x1xf32, #tpu.memory_space<vmem>>, vector<1x8x1xf32>,
      %cst_6 = arith.constant 0.000000e+00 : f32
      %14 = vector.broadcast %cst_6 : f32 to vector<1x8x1xf32>
      %c0_7 = arith.constant 0 : index
      %c0_8 = arith.constant 0 : index
      %c0_9 = arith.constant 0 : index
      %15 = vector.load %arg10[%c0_7, %c0_8, %c0_9] : memref<1x8x1xf32, #tpu.memory_space<vmem>>, vector<1x8x1xf32>
      tpu.vector_store %arg10[%c0_7, %c0_8, %c0_9], %14 {strides = array<i32>} : memref<1x8x1xf32, #tpu.memory_space<vmem>>, vector<1x8x1xf32>,
      %cst_10 = arith.constant 0.000000e+00 : f32
      %16 = vector.broadcast %cst_10 : f32 to vector<1x8x128xf32>
      %c0_11 = arith.constant 0 : index
      %c0_12 = arith.constant 0 : index
      %c0_13 = arith.constant 0 : index
      %17 = vector.load %arg11[%c0_11, %c0_12, %c0_13] : memref<1x8x128xf32, #tpu.memory_space<vmem>>, vector<1x8x128xf32>
      tpu.vector_store %arg11[%c0_11, %c0_12, %c0_13], %16 {strides = array<i32>} : memref<1x8x128xf32, #tpu.memory_space<vmem>>, vector<1x8x128xf32>,
    } else {
    }
    %c128_i32 = arith.constant 128 : i32
    %3 = arith.muli %arg1, %c128_i32 : i32
    %4 = arith.index_cast %arg0 : i32 to index
    %5 = memref.load %arg2[%4] : memref<2xi32, #tpu.memory_space<smem>>
    %6 = arith.cmpi slt, %3, %5 : i32
    %7 = arith.extui %6 : i1 to i32
    %c0_i32_1 = arith.constant 0 : i32
    %8 = arith.cmpi ne, %7, %c0_i32_1 : i32
    scf.if %8 {
      %c0 = arith.constant 0 : index
      %c0_4 = arith.constant 0 : index
      %c0_5 = arith.constant 0 : index
      %c0_6 = arith.constant 0 : index
      %12 = vector.load %arg4[%c0, %c0_4, %c0_5, %c0_6] : memref<1x8x32x1xf32, #tpu.memory_space<vmem>>, vector<1x8x32x1xf32>
      %c0_7 = arith.constant 0 : index
      %c0_8 = arith.constant 0 : index
      %c0_9 = arith.constant 0 : index
      %13 = vector.load %arg5[%c0_7, %c0_8, %c0_9] : memref<1x32x128xf32, #tpu.memory_space<vmem>>, vector<1x32x128xf32>
      %14 = vector.shape_cast %13 : vector<1x32x128xf32> to vector<1x1x32x128xf32>
      %15 = vector.broadcast %12 : vector<1x8x32x1xf32> to vector<1x8x32x128xf32>
      %16 = vector.broadcast %14 : vector<1x1x32x128xf32> to vector<1x8x32x128xf32>
      %17 = arith.addf %15, %16 : vector<1x8x32x128xf32>
      %18 = math.tanh %17 : vector<1x8x32x128xf32>
      %c0_10 = arith.constant 0 : index
      %c0_11 = arith.constant 0 : index
      %19 = vector.load %arg7[%c0_10, %c0_11] : memref<32x1xf32, #tpu.memory_space<vmem>>, vector<32x1xf32>
      %20 = vector.shape_cast %19 : vector<32x1xf32> to vector<1x1x32x1xf32>
      %21 = vector.broadcast %20 : vector<1x1x32x1xf32> to vector<1x8x32x128xf32>
      %22 = arith.mulf %18, %21 : vector<1x8x32x128xf32>
      %cst = arith.constant dense<0.000000e+00> : vector<1x8x128xf32>
      %23 = vector.multi_reduction <add>, %22, %cst [2] : vector<1x8x32x128xf32> to vector<1x8x128xf32>
      %c128_i32_12 = arith.constant 128 : i32
      %24 = arith.muli %arg1, %c128_i32_12 : i32
      %25 = tpu.iota {dimensions = array<i32: 2>} : vector<1x8x128xi32>
      %26 = vector.broadcast %24 : i32 to vector<1x8x128xi32>
      %27 = arith.addi %26, %25 : vector<1x8x128xi32>
      %c0_13 = arith.constant 0 : index
      %c0_14 = arith.constant 0 : index
      %c0_15 = arith.constant 0 : index
      %28 = vector.load %arg3[%c0_13, %c0_14, %c0_15] : memref<1x8x1xi32, #tpu.memory_space<vmem>>, vector<1x8x1xi32>
      %29 = vector.broadcast %28 : vector<1x8x1xi32> to vector<1x8x128xi32>
      %30 = arith.cmpi slt, %27, %29 : vector<1x8x128xi32>
      %cst_16 = arith.constant -1.000000e+20 : f32
      %31 = vector.broadcast %cst_16 : f32 to vector<1x8x128xf32>
      %32 = arith.select %30, %23, %31 : vector<1x8x128xi1>, vector<1x8x128xf32>
      %c10_i32 = arith.constant 10 : i32
      %33 = vector.broadcast %c10_i32 : i32 to vector<1x8x128xi32>
      %34 = arith.cmpi slt, %27, %33 : vector<1x8x128xi32>
      %cst_17 = arith.constant -3.000000e+38 : f32
      %35 = vector.broadcast %cst_17 : f32 to vector<1x8x128xf32>
      %36 = arith.select %34, %32, %35 : vector<1x8x128xi1>, vector<1x8x128xf32>
      %c0_18 = arith.constant 0 : index
      %c0_19 = arith.constant 0 : index
      %c0_20 = arith.constant 0 : index
      %37 = vector.load %arg9[%c0_18, %c0_19, %c0_20] : memref<1x8x1xf32, #tpu.memory_space<vmem>>, vector<1x8x1xf32>
      %cst_21 = arith.constant dense<0xFF800000> : vector<1x8xf32>
      %38 = vector.multi_reduction <maximumf>, %36, %cst_21 [2] : vector<1x8x128xf32> to vector<1x8xf32>
      %39 = vector.shape_cast %38 : vector<1x8xf32> to vector<1x8x1xf32>
      %40 = arith.maximumf %37, %39 : vector<1x8x1xf32>
      %41 = arith.subf %37, %40 : vector<1x8x1xf32>
      %42 = math.exp %41 : vector<1x8x1xf32>
      %43 = vector.broadcast %40 : vector<1x8x1xf32> to vector<1x8x128xf32>
      %44 = arith.subf %36, %43 : vector<1x8x128xf32>
      %45 = math.exp %44 : vector<1x8x128xf32>
      %c0_22 = arith.constant 0 : index
      %c0_23 = arith.constant 0 : index
      %c0_24 = arith.constant 0 : index
      %46 = vector.load %arg10[%c0_22, %c0_23, %c0_24] : memref<1x8x1xf32, #tpu.memory_space<vmem>>, vector<1x8x1xf32>
      %47 = arith.mulf %42, %46 : vector<1x8x1xf32>
      %cst_25 = arith.constant dense<0.000000e+00> : vector<1x8xf32>
      %48 = vector.multi_reduction <add>, %45, %cst_25 [2] : vector<1x8x128xf32> to vector<1x8xf32>
      %49 = vector.shape_cast %48 : vector<1x8xf32> to vector<1x8x1xf32>
      %50 = arith.addf %47, %49 : vector<1x8x1xf32>
      %c0_26 = arith.constant 0 : index
      %c0_27 = arith.constant 0 : index
      %c0_28 = arith.constant 0 : index
      %51 = vector.load %arg10[%c0_26, %c0_27, %c0_28] : memref<1x8x1xf32, #tpu.memory_space<vmem>>, vector<1x8x1xf32>
      tpu.vector_store %arg10[%c0_26, %c0_27, %c0_28], %50 {strides = array<i32>} : memref<1x8x1xf32, #tpu.memory_space<vmem>>, vector<1x8x1xf32>,
      %c0_29 = arith.constant 0 : index
      %c0_30 = arith.constant 0 : index
      %c0_31 = arith.constant 0 : index
      %52 = vector.load %arg11[%c0_29, %c0_30, %c0_31] : memref<1x8x128xf32, #tpu.memory_space<vmem>>, vector<1x8x128xf32>
      %53 = vector.broadcast %42 : vector<1x8x1xf32> to vector<1x8x128xf32>
      %54 = arith.mulf %53, %52 : vector<1x8x128xf32>
      %55 = arith.truncf %45 : vector<1x8x128xf32> to vector<1x8x128xbf16>
      %c0_32 = arith.constant 0 : index
      %c0_33 = arith.constant 0 : index
      %c0_34 = arith.constant 0 : index
      %56 = vector.load %arg6[%c0_32, %c0_33, %c0_34] : memref<1x128x128xbf16, #tpu.memory_space<vmem>>, vector<1x128x128xbf16>
      "tpu.trace_start"() <{level = 10 : i32, message = "bqt,btd->bqd"}> : () -> ()
      %cst_35 = arith.constant dense<0.000000e+00> : vector<1x8x128xf32>
      %57 = tpu.matmul %55, %56, %cst_35 {dimension_numbers = #tpu.dot_dimension_numbers<[2], [1], [1], [2], [0, 0, 0, 1, 1, 2], [0], [0]>} : vector<1x8x128xbf16>, vector<1x128x128xbf16>, vector<1x8x128xf32> -> vector<1x8x128xf32>
      "tpu.trace_stop"() : () -> ()
      %58 = arith.addf %54, %57 : vector<1x8x128xf32>
      %c0_36 = arith.constant 0 : index
      %c0_37 = arith.constant 0 : index
      %c0_38 = arith.constant 0 : index
      %59 = vector.load %arg11[%c0_36, %c0_37, %c0_38] : memref<1x8x128xf32, #tpu.memory_space<vmem>>, vector<1x8x128xf32>
      tpu.vector_store %arg11[%c0_36, %c0_37, %c0_38], %58 {strides = array<i32>} : memref<1x8x128xf32, #tpu.memory_space<vmem>>, vector<1x8x128xf32>,
      %c0_39 = arith.constant 0 : index
      %c0_40 = arith.constant 0 : index
      %c0_41 = arith.constant 0 : index
      %60 = vector.load %arg9[%c0_39, %c0_40, %c0_41] : memref<1x8x1xf32, #tpu.memory_space<vmem>>, vector<1x8x1xf32>
      tpu.vector_store %arg9[%c0_39, %c0_40, %c0_41], %40 {strides = array<i32>} : memref<1x8x1xf32, #tpu.memory_space<vmem>>, vector<1x8x1xf32>,
    } else {
    }
    %c0_i32_2 = arith.constant 0 : i32
    %9 = arith.cmpi eq, %arg1, %c0_i32_2 : i32
    %10 = arith.extui %9 : i1 to i32
    %c0_i32_3 = arith.constant 0 : i32
    %11 = arith.cmpi ne, %10, %c0_i32_3 : i32
    scf.if %11 {
      %c0 = arith.constant 0 : index
      %c0_4 = arith.constant 0 : index
      %c0_5 = arith.constant 0 : index
      %12 = vector.load %arg10[%c0, %c0_4, %c0_5] : memref<1x8x1xf32, #tpu.memory_space<vmem>>, vector<1x8x1xf32>
      %13 = tpu.reciprocal %12 {approx = true} : vector<1x8x1xf32> -> vector<1x8x1xf32>
      %c0_6 = arith.constant 0 : index
      %c0_7 = arith.constant 0 : index
      %c0_8 = arith.constant 0 : index
      %14 = vector.load %arg11[%c0_6, %c0_7, %c0_8] : memref<1x8x128xf32, #tpu.memory_space<vmem>>, vector<1x8x128xf32>
      %15 = vector.broadcast %13 : vector<1x8x1xf32> to vector<1x8x128xf32>
      %16 = arith.mulf %14, %15 : vector<1x8x128xf32>
      %c0_9 = arith.constant 0 : index
      %c0_10 = arith.constant 0 : index
      %c0_11 = arith.constant 0 : index
      %17 = vector.load %arg8[%c0_9, %c0_10, %c0_11] : memref<1x8x128xf32, #tpu.memory_space<vmem>>, vector<1x8x128xf32>
      tpu.vector_store %arg8[%c0_9, %c0_10, %c0_11], %16 {strides = array<i32>} : memref<1x8x128xf32, #tpu.memory_space<vmem>>, vector<1x8x128xf32>,
    } else {
    }
    return
  }
  func.func @transform_0(%arg0: i32, %arg1: i32, %arg2: memref<2xi32, #tpu.memory_space<smem>>) -> (i32, i32, i32) {
    %c0_i32 = arith.constant 0 : i32
    %c0_i32_0 = arith.constant 0 : i32
    %c0_i32_1 = arith.constant 0 : i32
    return %arg0, %c0_i32, %c0_i32_0 : i32, i32, i32
  }
  func.func @transform_1(%arg0: i32, %arg1: i32, %arg2: memref<2xi32, #tpu.memory_space<smem>>) -> (i32, i32, i32, i32) {
    %c0_i32 = arith.constant 0 : i32
    %c0_i32_0 = arith.constant 0 : i32
    %c0_i32_1 = arith.constant 0 : i32
    %c0_i32_2 = arith.constant 0 : i32
    return %arg0, %c0_i32, %c0_i32_0, %c0_i32_1 : i32, i32, i32, i32
  }
  func.func @transform_2(%arg0: i32, %arg1: i32, %arg2: memref<2xi32, #tpu.memory_space<smem>>) -> (i32, i32, i32) {
    %c0_i32 = arith.constant 0 : i32
    %c0_i32_0 = arith.constant 0 : i32
    return %arg0, %c0_i32, %arg1 : i32, i32, i32
  }
  func.func @transform_3(%arg0: i32, %arg1: i32, %arg2: memref<2xi32, #tpu.memory_space<smem>>) -> (i32, i32, i32) {
    %c0_i32 = arith.constant 0 : i32
    %c0_i32_0 = arith.constant 0 : i32
    return %arg0, %arg1, %c0_i32 : i32, i32, i32
  }
  func.func @transform_4(%arg0: i32, %arg1: i32, %arg2: memref<2xi32, #tpu.memory_space<smem>>) -> (i32, i32) {
    %c0_i32 = arith.constant 0 : i32
    %c0_i32_0 = arith.constant 0 : i32
    %c0_i32_1 = arith.constant 0 : i32
    return %c0_i32, %c0_i32_0 : i32, i32
  }
  func.func @transform_5(%arg0: i32, %arg1: i32, %arg2: memref<2xi32, #tpu.memory_space<smem>>) -> (i32, i32, i32) {
    %c0_i32 = arith.constant 0 : i32
    %c0_i32_0 = arith.constant 0 : i32
    %c0_i32_1 = arith.constant 0 : i32
    return %arg0, %c0_i32, %c0_i32_0 : i32, i32, i32
  }
}

</mosaic_0001>

<llo_original>
// kernel: tpu_custom_call.1
$region0: #{tpu_custom_call.1}
  #allocation0 [shape = 'u32[]', space=smem, size = 0x4, offset = 0x4, fixed_abs, tag = 'smem constant byte address 0x4 - core index']
  #allocation1 [shape = 'u32[144,128]{1,0:T(1,128)}', space=vmem, size = 0x12000, scoped, tag = 'internal scratch']
  #allocation2 [shape = 'f32[1,8,1]{2,1,0:T(8,128)}', space=vmem, size = 0x1000, scoped, tag = 'scratch operand']
  #allocation3 [shape = 'f32[1,8,1]{2,1,0:T(8,128)}', space=vmem, size = 0x1000, scoped, tag = 'scratch operand']
  #allocation4 [shape = 'f32[1,8,128]{2,1,0:T(8,128)}', space=vmem, size = 0x1000, scoped, tag = 'scratch operand']
  #allocation5 [shape = 's32[1]{0}', space=sflag, size = 0x4, scoped, tag = 'scoped memory for tpu_custom_call.1']
  #allocation6 [shape = 'u8[512]{0}', space=smem, size = 0x200, scoped, tag = 'prefetched SMEM operand 0']
  %s0 = inlined_call_operand.vmem [shape: s32[2], index: 0, kind: input, shape index: {}]
  %s1 = inlined_call_operand.vmem [shape: s32[2,8,1], index: 1, kind: input, shape index: {}]
  %s2 = inlined_call_operand.vmem [shape: f32[2,8,32,1], index: 2, kind: input, shape index: {}]
  %s3 = inlined_call_operand.vmem [shape: f32[2,32,128], index: 3, kind: input, shape index: {}]
  %s4 = inlined_call_operand.vmem [shape: bf16[2,128,128], index: 4, kind: input, shape index: {}]
  %s5 = inlined_call_operand.vmem [shape: f32[32,1], index: 5, kind: input, shape index: {}]
  %s6 = inlined_call_operand.hbm [shape: f32[2,8,128], index: 6, kind: output, shape index: {}]
  %s7 = sld [smem:[#allocation0]]
  $region65: #{tpu_custom_call.1} parent=0
    _
  %s9 = ssub.s32 1, %s7
  %s10 = scalar_select 0, %s9, %s7
  %s11 = sshll.u32 %s0, 4
  %s12 = int_to_ptr.vmem [resolvable:$true] %s11
  %14 = dma.vmem_to_smem %s12, 16, [#allocation6], [#allocation5]
  %15 = dma.done [#allocation5], 16
  %16 = sfence
  $region1: #{tpu_custom_call.1} parent=0
    #allocation7 [shape = 'u8[8192]{0}', space=vmem, size = 0x2000, scoped, tag = 'output window, operand 0']
    #allocation8 [shape = 's32[2]{0}', space=sflag, size = 0x8, scoped, tag = 'scoped memory for tpu_custom_call.1']
    %17 = vsyncpa [#allocation8], 0
    %s18 = scalar_lea.sflag [#allocation8], 1
    %19 = vsyncpa %s18, 0
    loop: start=0, step=1, limit=4
    $region2: #{tpu_custom_call.1} parent=1 // loop_pre_header
      _
    $region3: #{tpu_custom_call.1} parent=1 // loop_header
      %s21 = sphi 0, %s25
      %p22 = scmp.ge.s32.totalorder %s21, 4
      %s28 = sphi 0, %s40
      %s29 = sphi 0, %s36
      %s30 = sphi 0, %s28
      %s31 = sphi 0, %s29
      %s32 = sphi 0, %s30
      %s33 = sphi 0, %s31
      %s43 = sphi 0, %s45
      %s46 = sphi 0, %s43
      %s47 = sphi 0, %s46
      %s63 = sphi 0, %s47
      %s69 = sphi 0, %s71
      %s72 = sphi 0, %s69
      %s73 = sphi 0, %s72
      %s89 = sphi 0, %s73
      %s97 = sphi 0, %s99
      %s100 = sphi 0, %s97
      %s101 = sphi 0, %s100
      %s117 = sphi 0, %s101
      %s125 = sphi 0, %s127
      %s128 = sphi 0, %s125
      %s129 = sphi 0, %s128
      %s145 = sphi 0, %s129
      %s149 = sphi 0, %s149
      %s151 = sphi 0, %s149
      %s152 = sphi 0, %s151
      %s166 = sphi 0, %s152
      %s172 = sphi 0, %s174
      %s175 = sphi 0, %s172
      %s176 = sphi 0, %s175
      %s192 = sphi 0, %s176
    $region4: #{tpu_custom_call.1} parent=1 // loop_header_branch
      %24 = sbr.rel (%p22) target = $region8
    $region5: #{tpu_custom_call.1} parent=1 // loop_body
      %s26 = ssub.s32 %s21, 1
      %s27 = ssub.s32 %s21, 2
      %s34 = sadd.s32 1, %s29
      %p35 = scmp.ge.s32.totalorder %s34, 1
      %s36 = scalar_select %p35, 0, %s34
      %s37 = sadd.s32 1, %s28
      %s38 = scalar_select %p35, %s37, %s28
      %p39 = scmp.ge.s32.totalorder %s38, 2
      %s40 = scalar_select %p39, 0, %s38
      %s41 = ssub.s32 %s28, %s40
      %p42 = scmp.eq.s32.totalorder %s41, 0
      %s44 = sadd.s32 %s43, 1
      %s45 = scalar_select %p42, %s43, %s44
      %p48 = pneg %p42
      %p49 = scmp.eq.s32.totalorder %s21, 1
      %p50 = por %p48, %p49
      %p51 = scmp.ne.s32.totalorder %s43, %s46
      %p52 = scmp.eq.s32.totalorder %s21, 0
      %p53 = por %p51, %p52
      %p54 = scmp.ne.s32.totalorder %s43, %s46
      %p55 = scmp.eq.s32.totalorder %s26, 1
      %p56 = por %p54, %p55
      %p57 = scmp.ne.s32.totalorder %s46, %s47
      %p58 = scmp.eq.s32.totalorder %s26, 0
      %p59 = por %p57, %p58
      %p60 = scmp.ne.s32.totalorder %s46, %s47
      %p61 = scmp.eq.s32.totalorder %s27, 1
      %p62 = por %p60, %p61
      %p64 = scmp.ne.s32.totalorder %s47, %s63
      %p65 = scmp.eq.s32.totalorder %s27, 0
      %p66 = por %p64, %p65
      %s67 = ssub.s32 %s28, %s40
      %p68 = scmp.eq.s32.totalorder %s67, 0
      %s70 = sadd.s32 %s69, 1
      %s71 = scalar_select %p68, %s69, %s70
      %p74 = pneg %p68
      %p75 = scmp.eq.s32.totalorder %s21, 1
      %p76 = por %p74, %p75
      %p77 = scmp.ne.s32.totalorder %s69, %s72
      %p78 = scmp.eq.s32.totalorder %s21, 0
      %p79 = por %p77, %p78
      %p80 = scmp.ne.s32.totalorder %s69, %s72
      %p81 = scmp.eq.s32.totalorder %s26, 1
      %p82 = por %p80, %p81
      %p83 = scmp.ne.s32.totalorder %s72, %s73
      %p84 = scmp.eq.s32.totalorder %s26, 0
      %p85 = por %p83, %p84
      %p86 = scmp.ne.s32.totalorder %s72, %s73
      %p87 = scmp.eq.s32.totalorder %s27, 1
      %p88 = por %p86, %p87
      %p90 = scmp.ne.s32.totalorder %s73, %s89
      %p91 = scmp.eq.s32.totalorder %s27, 0
      %p92 = por %p90, %p91
      %s93 = ssub.s32 %s28, %s40
      %s94 = ssub.s32 %s29, %s36
      %s95 = sor.u32 %s93, %s94
      %p96 = scmp.eq.s32.totalorder %s95, 0
      %s98 = sadd.s32 %s97, 1
      %s99 = scalar_select %p96, %s97, %s98
      %p102 = pneg %p96
      %p103 = scmp.eq.s32.totalorder %s21, 1
      %p104 = por %p102, %p103
      %p105 = scmp.ne.s32.totalorder %s97, %s100
      %p106 = scmp.eq.s32.totalorder %s21, 0
      %p107 = por %p105, %p106
      %p108 = scmp.ne.s32.totalorder %s97, %s100
      %p109 = scmp.eq.s32.totalorder %s26, 1
      %p110 = por %p108, %p109
      %p111 = scmp.ne.s32.totalorder %s100, %s101
      %p112 = scmp.eq.s32.totalorder %s26, 0
      %p113 = por %p111, %p112
      %p114 = scmp.ne.s32.totalorder %s100, %s101
      %p115 = scmp.eq.s32.totalorder %s27, 1
      %p116 = por %p114, %p115
      %p118 = scmp.ne.s32.totalorder %s101, %s117
      %p119 = scmp.eq.s32.totalorder %s27, 0
      %p120 = por %p118, %p119
      %s121 = ssub.s32 %s28, %s40
      %s122 = ssub.s32 %s29, %s36
      %s123 = sor.u32 %s121, %s122
      %p124 = scmp.eq.s32.totalorder %s123, 0
      %s126 = sadd.s32 %s125, 1
      %s127 = scalar_select %p124, %s125, %s126
      %p130 = pneg %p124
      %p131 = scmp.eq.s32.totalorder %s21, 1
      %p132 = por %p130, %p131
      %p133 = scmp.ne.s32.totalorder %s125, %s128
      %p134 = scmp.eq.s32.totalorder %s21, 0
      %p135 = por %p133, %p134
      %p136 = scmp.ne.s32.totalorder %s125, %s128
      %p137 = scmp.eq.s32.totalorder %s26, 1
      %p138 = por %p136, %p137
      %p139 = scmp.ne.s32.totalorder %s128, %s129
      %p140 = scmp.eq.s32.totalorder %s26, 0
      %p141 = por %p139, %p140
      %p142 = scmp.ne.s32.totalorder %s128, %s129
      %p143 = scmp.eq.s32.totalorder %s27, 1
      %p144 = por %p142, %p143
      %p146 = scmp.ne.s32.totalorder %s129, %s145
      %p147 = scmp.eq.s32.totalorder %s27, 0
      %p148 = por %p146, %p147
      %s150 = sadd.s32 %s149, 1
      %p153 = scmp.eq.s32.totalorder %s21, 1
      %p154 = scmp.ne.s32.totalorder %s149, %s151
      %p155 = scmp.eq.s32.totalorder %s21, 0
      %p156 = por %p154, %p155
      %p157 = scmp.ne.s32.totalorder %s149, %s151
      %p158 = scmp.eq.s32.totalorder %s26, 1
      %p159 = por %p157, %p158
      %p160 = scmp.ne.s32.totalorder %s151, %s152
      %p161 = scmp.eq.s32.totalorder %s26, 0
      %p162 = por %p160, %p161
      %p163 = scmp.ne.s32.totalorder %s151, %s152
      %p164 = scmp.eq.s32.totalorder %s27, 1
      %p165 = por %p163, %p164
      %p167 = scmp.ne.s32.totalorder %s152, %s166
      %p168 = scmp.eq.s32.totalorder %s27, 0
      %p169 = por %p167, %p168
      %s170 = ssub.s32 %s28, %s40
      %p171 = scmp.eq.s32.totalorder %s170, 0
      %s173 = sadd.s32 %s172, 1
      %s174 = scalar_select %p171, %s172, %s173
      %p177 = pneg %p171
      %p178 = scmp.eq.s32.totalorder %s21, 1
      %p179 = por %p177, %p178
      %p180 = scmp.ne.s32.totalorder %s172, %s175
      %p181 = scmp.eq.s32.totalorder %s21, 0
      %p182 = por %p180, %p181
      %p183 = scmp.ne.s32.totalorder %s172, %s175
      %p184 = scmp.eq.s32.totalorder %s26, 1
      %p185 = por %p183, %p184
      %p186 = scmp.ne.s32.totalorder %s175, %s176
      %p187 = scmp.eq.s32.totalorder %s26, 0
      %p188 = por %p186, %p187
      %p189 = scmp.ne.s32.totalorder %s175, %s176
      %p190 = scmp.eq.s32.totalorder %s27, 1
      %p191 = por %p189, %p190
      %p193 = scmp.ne.s32.totalorder %s176, %s192
      %p194 = scmp.eq.s32.totalorder %s27, 0
      %p195 = por %p193, %p194
      %p196 = scmp.le.s32.totalorder 1, %s21
      %p197 = scmp.lt.s32.totalorder %s21, 3
      %p198 = pnand %p196, %p197
      %p199 = pneg %p198
      // Predicated region
      $region9: #{tpu_custom_call.1} parent=5 // pred_check
        _
      $region10: #{tpu_custom_call.1} parent=5 // pred_check_branch
        %201 = sbr.rel (%p198) target = $region12
      $region11: #{tpu_custom_call.1} parent=5 // pred_region
        %s202 = ssub.s32 %s21, 1
        // Predicated region
        $region13: #{tpu_custom_call.1} parent=11 // pred_check
          %p203 = pneg %p162
        $region14: #{tpu_custom_call.1} parent=11 // pred_check_branch
          %205 = sbr.rel (%p203) target = $region16
        $region15: #{tpu_custom_call.1} parent=11 // pred_region
          _
        $region16: #{tpu_custom_call.1} parent=11 // pred_fallthru
          _
      $region12: #{tpu_custom_call.1} parent=5 // pred_fallthru
        _
      %p206 = scmp.lt.s32.totalorder %s21, 2
      // Predicated region
      $region17: #{tpu_custom_call.1} parent=5 // pred_check
        %p207 = pneg %p206
      $region18: #{tpu_custom_call.1} parent=5 // pred_check_branch
        %209 = sbr.rel (%p207) target = $region20
      $region19: #{tpu_custom_call.1} parent=5 // pred_region
        // Predicated region
        $region21: #{tpu_custom_call.1} parent=19 // pred_check
          %p210 = pneg %p53
        $region22: #{tpu_custom_call.1} parent=19 // pred_check_branch
          %212 = sbr.rel (%p210) target = $region24
        $region23: #{tpu_custom_call.1} parent=19 // pred_region
          %p213 = scmp.lt.s32.totalorder %s28, 1
          %s214 = scalar_select %p213, %s28, 1
          %s215 = smul.addr %s214, 8
          %s216 = scalar_lea.vmem %s1, %s215
        $region24: #{tpu_custom_call.1} parent=19 // pred_fallthru
          _
        // Predicated region
        $region25: #{tpu_custom_call.1} parent=19 // pred_check
          %p217 = pneg %p79
        $region26: #{tpu_custom_call.1} parent=19 // pred_check_branch
          %219 = sbr.rel (%p217) target = $region28
        $region27: #{tpu_custom_call.1} parent=19 // pred_region
          %p220 = scmp.lt.s32.totalorder %s28, 1
          %s221 = scalar_select %p220, %s28, 1
          %s222 = smul.addr %s221, 32
          %s223 = smul.addr %s222, 8
          %s224 = scalar_lea.vmem %s2, %s223
        $region28: #{tpu_custom_call.1} parent=19 // pred_fallthru
          _
        // Predicated region
        $region29: #{tpu_custom_call.1} parent=19 // pred_check
          %p225 = pneg %p107
        $region30: #{tpu_custom_call.1} parent=19 // pred_check_branch
          %227 = sbr.rel (%p225) target = $region32
        $region31: #{tpu_custom_call.1} parent=19 // pred_region
          %p228 = scmp.lt.s32.totalorder %s28, 1
          %s229 = scalar_select %p228, %s28, 1
          %p230 = scmp.lt.s32.totalorder %s29, 0
          %s231 = scalar_select %p230, %s29, 0
          %s232 = smul.addr %s229, 4
          %s233 = sadd.s32 %s231, %s232
          %s234 = smul.addr %s233, 8
          %s235 = scalar_lea.vmem %s3, %s234
        $region32: #{tpu_custom_call.1} parent=19 // pred_fallthru
          _
        // Predicated region
        $region33: #{tpu_custom_call.1} parent=19 // pred_check
          %p236 = pneg %p135
        $region34: #{tpu_custom_call.1} parent=19 // pred_check_branch
          %238 = sbr.rel (%p236) target = $region36
        $region35: #{tpu_custom_call.1} parent=19 // pred_region
          %s239 = smul.u32 16, %s29
          %p240 = scmp.lt.s32.totalorder %s28, 1
          %s241 = scalar_select %p240, %s28, 1
          %p242 = scmp.lt.s32.totalorder %s239, 15
          %s243 = scalar_select %p242, %s239, 15
          %s244 = smul.addr %s241, 16
          %s245 = sadd.s32 %s243, %s244
          %s246 = smul.addr %s245, 4
          %s247 = scalar_lea.vmem %s4, %s246
          %s248 = smul.u32 16, %s29
        $region36: #{tpu_custom_call.1} parent=19 // pred_fallthru
          _
      $region20: #{tpu_custom_call.1} parent=5 // pred_fallthru
        _
      %p249 = scmp.le.s32.totalorder 1, %s21
      %p250 = scmp.lt.s32.totalorder %s21, 3
      %p251 = pnand %p249, %p250
      %p252 = pneg %p251
      // Predicated region
      $region37: #{tpu_custom_call.1} parent=5 // pred_check
        _
      $region38: #{tpu_custom_call.1} parent=5 // pred_check_branch
        %254 = sbr.rel (%p251) target = $region40
      $region39: #{tpu_custom_call.1} parent=5 // pred_region
        %s255 = ssub.s32 %s21, 1
        %p256 = scmp.lt.s32.totalorder %s30, 1
        %s257 = scalar_select %p256, %s30, 1
        %s258 = smul.addr %s257, 8
        %s259 = scalar_lea.vmem %s1, %s258
        %p260 = pneg %p59
        %p261 = pneg %p56
        %p262 = scmp.lt.s32.totalorder %s30, 1
        %s263 = scalar_select %p262, %s30, 1
        %s264 = smul.addr %s263, 32
        %s265 = smul.addr %s264, 8
        %s266 = scalar_lea.vmem %s2, %s265
        %p267 = pneg %p85
        %p268 = pneg %p82
        %p269 = scmp.lt.s32.totalorder %s30, 1
        %s270 = scalar_select %p269, %s30, 1
        %p271 = scmp.lt.s32.totalorder %s31, 0
        %s272 = scalar_select %p271, %s31, 0
        %s273 = smul.addr %s270, 4
        %s274 = sadd.s32 %s272, %s273
        %s275 = smul.addr %s274, 8
        %s276 = scalar_lea.vmem %s3, %s275
        %p277 = pneg %p113
        %p278 = pneg %p110
        %s279 = smul.u32 16, %s31
        %p280 = scmp.lt.s32.totalorder %s30, 1
        %s281 = scalar_select %p280, %s30, 1
        %p282 = scmp.lt.s32.totalorder %s279, 15
        %s283 = scalar_select %p282, %s279, 15
        %s284 = smul.addr %s281, 16
        %s285 = sadd.s32 %s283, %s284
        %s286 = smul.addr %s285, 4
        %s287 = scalar_lea.vmem %s4, %s286
        %p288 = pneg %p141
        %p289 = pneg %p138
        %p290 = pneg %p162
        %p291 = pneg %p159
        %p292 = pneg %p188
        %p293 = pneg %p185
        %s294 = sand.u32 %s175, 1
        %s295 = scalar_lea.sflag [#allocation8], %s294
        %s296 = sand.u32 %s175, 1
        %s297 = smul.addr %s296, 8
        %s298 = scalar_lea.vmem [#allocation7], %s297
        %p299 = scmp.lt.s32.totalorder %s30, 1
        %s300 = scalar_select %p299, %s30, 1
        %s301 = smul.addr %s300, 8
        %s302 = scalar_lea.vmem %s1, %s301
        %p303 = scmp.lt.s32.totalorder %s30, 1
        %s304 = scalar_select %p303, %s30, 1
        %s305 = smul.addr %s304, 32
        %s306 = smul.addr %s305, 8
        %s307 = scalar_lea.vmem %s2, %s306
        %p308 = scmp.lt.s32.totalorder %s30, 1
        %s309 = scalar_select %p308, %s30, 1
        %p310 = scmp.lt.s32.totalorder %s31, 0
        %s311 = scalar_select %p310, %s31, 0
        %s312 = smul.addr %s309, 4
        %s313 = sadd.s32 %s311, %s312
        %s314 = smul.addr %s313, 8
        %s315 = scalar_lea.vmem %s3, %s314
        %s316 = smul.u32 16, %s31
        %p317 = scmp.lt.s32.totalorder %s30, 1
        %s318 = scalar_select %p317, %s30, 1
        %p319 = scmp.lt.s32.totalorder %s316, 15
        %s320 = scalar_select %p319, %s316, 15
        %s321 = smul.addr %s318, 16
        %s322 = sadd.s32 %s320, %s321
        %s323 = smul.addr %s322, 4
        %s324 = scalar_lea.vmem %s4, %s323
        %s325 = smul.u32 16, %s31
        %p327 = scmp.eq.s32.totalorder %s31, 0
        // Predicated region
        $region41: #{tpu_custom_call.1} parent=39 // pred_check
          %p328 = pneg %p327
        $region42: #{tpu_custom_call.1} parent=39 // pred_check_branch
          %330 = sbr.rel (%p328) target = $region44
        $region43: #{tpu_custom_call.1} parent=39 // pred_region
          %vm331 = vcmask 7168
          %332 = vst.msk [vmem:[#allocation2] sm:$0xff] %vm331, -inf
          %333 = vst.msk [vmem:[#allocation3] sm:$0xff] %vm331, 0.0
          %334 = vst [vmem:[#allocation4] sm:$0xff] 0.0
        $region44: #{tpu_custom_call.1} parent=39 // pred_fallthru
          _
        %s335 = smul.u32 %s31, 128
        %s336 = sld [smem:[#allocation6 + %s30]]
        %p337 = scmp.lt.s32.totalorder %s335, %s336
        // Predicated region
        $region45: #{tpu_custom_call.1} parent=39 // pred_check
          %p338 = pneg %p337
        $region46: #{tpu_custom_call.1} parent=39 // pred_check_branch
          %340 = sbr.rel (%p338) target = $region48
        $region47: #{tpu_custom_call.1} parent=39 // pred_region
          %v341 = vld [vmem:[%s307] sm:$0xff]
          %v342 = vld [vmem:[%s307 + $0x8] sm:$0xff]
          %v343 = vld [vmem:[%s307 + $0x10] sm:$0xff]
          %v344 = vld [vmem:[%s307 + $0x18] sm:$0xff]
          %v345 = vld [vmem:[%s307 + $0x20] sm:$0xff]
          %v346 = vld [vmem:[%s307 + $0x28] sm:$0xff]
          %v347 = vld [vmem:[%s307 + $0x30] sm:$0xff]
          %v348 = vld [vmem:[%s307 + $0x38] sm:$0xff]
          %v349 = vld [vmem:[%s307 + $0x40] sm:$0xff]
          %v350 = vld [vmem:[%s307 + $0x48] sm:$0xff]
          %v351 = vld [vmem:[%s307 + $0x50] sm:$0xff]
          %v352 = vld [vmem:[%s307 + $0x58] sm:$0xff]
          %v353 = vld [vmem:[%s307 + $0x60] sm:$0xff]
          %v354 = vld [vmem:[%s307 + $0x68] sm:$0xff]
          %v355 = vld [vmem:[%s307 + $0x70] sm:$0xff]
          %v356 = vld [vmem:[%s307 + $0x78] sm:$0xff]
          %v357 = vld [vmem:[%s307 + $0x80] sm:$0xff]
          %v358 = vld [vmem:[%s307 + $0x88] sm:$0xff]
          %v359 = vld [vmem:[%s307 + $0x90] sm:$0xff]
          %v360 = vld [vmem:[%s307 + $0x98] sm:$0xff]
          %v361 = vld [vmem:[%s307 + $0xa0] sm:$0xff]
          %v362 = vld [vmem:[%s307 + $0xa8] sm:$0xff]
          %v363 = vld [vmem:[%s307 + $0xb0] sm:$0xff]
          %v364 = vld [vmem:[%s307 + $0xb8] sm:$0xff]
          %v365 = vld [vmem:[%s307 + $0xc0] sm:$0xff]
          %v366 = vld [vmem:[%s307 + $0xc8] sm:$0xff]
          %v367 = vld [vmem:[%s307 + $0xd0] sm:$0xff]
          %v368 = vld [vmem:[%s307 + $0xd8] sm:$0xff]
          %v369 = vld [vmem:[%s307 + $0xe0] sm:$0xff]
          %v370 = vld [vmem:[%s307 + $0xe8] sm:$0xff]
          %v371 = vld [vmem:[%s307 + $0xf0] sm:$0xff]
          %v372 = vld [vmem:[%s307 + $0xf8] sm:$0xff]
          %v373 = vld [vmem:[%s315] sm:$0xff]
          %v374 = vld [vmem:[%s315 + $0x8] sm:$0xff]
          %v375 = vld [vmem:[%s315 + $0x10] sm:$0xff]
          %v376 = vld [vmem:[%s315 + $0x18] sm:$0xff]
          %378 = vset.pattern.permute.xlu0 0
          %379 = vperm.xlu0 %378, %v341
          %v380 = vpop.permute.xlu0 %379
          %383 = vset.pattern.permute.xlu0 0
          %384 = vperm.xlu0 %383, %v342
          %v385 = vpop.permute.xlu0 %384
          %388 = vset.pattern.permute.xlu0 0
          %389 = vperm.xlu0 %388, %v343
          %v390 = vpop.permute.xlu0 %389
          %393 = vset.pattern.permute.xlu0 0
          %394 = vperm.xlu0 %393, %v344
          %v395 = vpop.permute.xlu0 %394
          %398 = vset.pattern.permute.xlu0 0
          %399 = vperm.xlu0 %398, %v345
          %v400 = vpop.permute.xlu0 %399
          %403 = vset.pattern.permute.xlu0 0
          %404 = vperm.xlu0 %403, %v346
          %v405 = vpop.permute.xlu0 %404
          %408 = vset.pattern.permute.xlu0 0
          %409 = vperm.xlu0 %408, %v347
          %v410 = vpop.permute.xlu0 %409
          %413 = vset.pattern.permute.xlu0 0
          %414 = vperm.xlu0 %413, %v348
          %v415 = vpop.permute.xlu0 %414
          %418 = vset.pattern.permute.xlu0 0
          %419 = vperm.xlu0 %418, %v349
          %v420 = vpop.permute.xlu0 %419
          %423 = vset.pattern.permute.xlu0 0
          %424 = vperm.xlu0 %423, %v350
          %v425 = vpop.permute.xlu0 %424
          %428 = vset.pattern.permute.xlu0 0
          %429 = vperm.xlu0 %428, %v351
          %v430 = vpop.permute.xlu0 %429
          %433 = vset.pattern.permute.xlu0 0
          %434 = vperm.xlu0 %433, %v352
          %v435 = vpop.permute.xlu0 %434
          %438 = vset.pattern.permute.xlu0 0
          %439 = vperm.xlu0 %438, %v353
          %v440 = vpop.permute.xlu0 %439
          %443 = vset.pattern.permute.xlu0 0
          %444 = vperm.xlu0 %443, %v354
          %v445 = vpop.permute.xlu0 %444
          %448 = vset.pattern.permute.xlu0 0
          %449 = vperm.xlu0 %448, %v355
          %v450 = vpop.permute.xlu0 %449
          %453 = vset.pattern.permute.xlu0 0
          %454 = vperm.xlu0 %453, %v356
          %v455 = vpop.permute.xlu0 %454
          %458 = vset.pattern.permute.xlu0 0
          %459 = vperm.xlu0 %458, %v357
          %v460 = vpop.permute.xlu0 %459
          %463 = vset.pattern.permute.xlu0 0
          %464 = vperm.xlu0 %463, %v358
          %v465 = vpop.permute.xlu0 %464
          %468 = vset.pattern.permute.xlu0 0
          %469 = vperm.xlu0 %468, %v359
          %v470 = vpop.permute.xlu0 %469
          %473 = vset.pattern.permute.xlu0 0
          %474 = vperm.xlu0 %473, %v360
          %v475 = vpop.permute.xlu0 %474
          %478 = vset.pattern.permute.xlu0 0
          %479 = vperm.xlu0 %478, %v361
          %v480 = vpop.permute.xlu0 %479
          %483 = vset.pattern.permute.xlu0 0
          %484 = vperm.xlu0 %483, %v362
          %v485 = vpop.permute.xlu0 %484
          %488 = vset.pattern.permute.xlu0 0
          %489 = vperm.xlu0 %488, %v363
          %v490 = vpop.permute.xlu0 %489
          %493 = vset.pattern.permute.xlu0 0
          %494 = vperm.xlu0 %493, %v364
          %v495 = vpop.permute.xlu0 %494
          %498 = vset.pattern.permute.xlu0 0
          %499 = vperm.xlu0 %498, %v365
          %v500 = vpop.permute.xlu0 %499
          %503 = vset.pattern.permute.xlu0 0
          %504 = vperm.xlu0 %503, %v366
          %v505 = vpop.permute.xlu0 %504
          %508 = vset.pattern.permute.xlu0 0
          %509 = vperm.xlu0 %508, %v367
          %v510 = vpop.permute.xlu0 %509
          %513 = vset.pattern.permute.xlu0 0
          %514 = vperm.xlu0 %513, %v368
          %v515 = vpop.permute.xlu0 %514
          %518 = vset.pattern.permute.xlu0 0
          %519 = vperm.xlu0 %518, %v369
          %v520 = vpop.permute.xlu0 %519
          %523 = vset.pattern.permute.xlu0 0
          %524 = vperm.xlu0 %523, %v370
          %v525 = vpop.permute.xlu0 %524
          %528 = vset.pattern.permute.xlu0 0
          %529 = vperm.xlu0 %528, %v371
          %v530 = vpop.permute.xlu0 %529
          %533 = vset.pattern.permute.xlu0 0
          %534 = vperm.xlu0 %533, %v372
          %v535 = vpop.permute.xlu0 %534
          %v537 = vadd.f32 %v380, %v373
          %v538 = vadd.f32 %v385, %v374
          %v539 = vadd.f32 %v390, %v375
          %v540 = vadd.f32 %v395, %v376
          %v541 = vadd.f32 %v400, %v373
          %v542 = vadd.f32 %v405, %v374
          %v543 = vadd.f32 %v410, %v375
          %v544 = vadd.f32 %v415, %v376
          %v545 = vadd.f32 %v420, %v373
          %v546 = vadd.f32 %v425, %v374
          %v547 = vadd.f32 %v430, %v375
          %v548 = vadd.f32 %v435, %v376
          %v549 = vadd.f32 %v440, %v373
          %v550 = vadd.f32 %v445, %v374
          %v551 = vadd.f32 %v450, %v375
          %v552 = vadd.f32 %v455, %v376
          %v553 = vadd.f32 %v460, %v373
          %v554 = vadd.f32 %v465, %v374
          %v555 = vadd.f32 %v470, %v375
          %v556 = vadd.f32 %v475, %v376
          %v557 = vadd.f32 %v480, %v373
          %v558 = vadd.f32 %v485, %v374
          %v559 = vadd.f32 %v490, %v375
          %v560 = vadd.f32 %v495, %v376
          %v561 = vadd.f32 %v500, %v373
          %v562 = vadd.f32 %v505, %v374
          %v563 = vadd.f32 %v510, %v375
          %v564 = vadd.f32 %v515, %v376
          %v565 = vadd.f32 %v520, %v373
          %v566 = vadd.f32 %v525, %v374
          %v567 = vadd.f32 %v530, %v375
          %v568 = vadd.f32 %v535, %v376
          %v569 = vtanh.pop %v537
          %v570 = vtanh.pop %v538
          %v571 = vtanh.pop %v539
          %v572 = vtanh.pop %v540
          %v573 = vtanh.pop %v541
          %v574 = vtanh.pop %v542
          %v575 = vtanh.pop %v543
          %v576 = vtanh.pop %v544
          %v577 = vtanh.pop %v545
          %v578 = vtanh.pop %v546
          %v579 = vtanh.pop %v547
          %v580 = vtanh.pop %v548
          %v581 = vtanh.pop %v549
          %v582 = vtanh.pop %v550
          %v583 = vtanh.pop %v551
          %v584 = vtanh.pop %v552
          %v585 = vtanh.pop %v553
          %v586 = vtanh.pop %v554
          %v587 = vtanh.pop %v555
          %v588 = vtanh.pop %v556
          %v589 = vtanh.pop %v557
          %v590 = vtanh.pop %v558
          %v591 = vtanh.pop %v559
          %v592 = vtanh.pop %v560
          %v593 = vtanh.pop %v561
          %v594 = vtanh.pop %v562
          %v595 = vtanh.pop %v563
          %v596 = vtanh.pop %v564
          %v597 = vtanh.pop %v565
          %v598 = vtanh.pop %v566
          %v599 = vtanh.pop %v567
          %v600 = vtanh.pop %v568
          %v601 = vld [vmem:[%s5] sm:$0xff]
          %v602 = vld [vmem:[%s5 + $0x8] sm:$0xff]
          %v603 = vld [vmem:[%s5 + $0x10] sm:$0xff]
          %v604 = vld [vmem:[%s5 + $0x18] sm:$0xff]
          %606 = vset.pattern.permute.xlu0 0
          %607 = vperm.xlu0 %606, %v601
          %v608 = vpop.permute.xlu0 %607
          %611 = vset.pattern.permute.xlu0 0
          %612 = vperm.xlu0 %611, %v602
          %v613 = vpop.permute.xlu0 %612
          %616 = vset.pattern.permute.xlu0 0
          %617 = vperm.xlu0 %616, %v603
          %v618 = vpop.permute.xlu0 %617
          %621 = vset.pattern.permute.xlu0 0
          %622 = vperm.xlu0 %621, %v604
          %v623 = vpop.permute.xlu0 %622
          %v625 = vmul.f32 %v569, %v608
          %v626 = vmul.f32 %v570, %v613
          %v627 = vmul.f32 %v571, %v618
          %v628 = vmul.f32 %v572, %v623
          %v629 = vmul.f32 %v573, %v608
          %v630 = vmul.f32 %v574, %v613
          %v631 = vmul.f32 %v575, %v618
          %v632 = vmul.f32 %v576, %v623
          %v633 = vmul.f32 %v577, %v608
          %v634 = vmul.f32 %v578, %v613
          %v635 = vmul.f32 %v579, %v618
          %v636 = vmul.f32 %v580, %v623
          %v637 = vmul.f32 %v581, %v608
          %v638 = vmul.f32 %v582, %v613
          %v639 = vmul.f32 %v583, %v618
          %v640 = vmul.f32 %v584, %v623
          %v641 = vmul.f32 %v585, %v608
          %v642 = vmul.f32 %v586, %v613
          %v643 = vmul.f32 %v587, %v618
          %v644 = vmul.f32 %v588, %v623
          %v645 = vmul.f32 %v589, %v608
          %v646 = vmul.f32 %v590, %v613
          %v647 = vmul.f32 %v591, %v618
          %v648 = vmul.f32 %v592, %v623
          %v649 = vmul.f32 %v593, %v608
          %v650 = vmul.f32 %v594, %v613
          %v651 = vmul.f32 %v595, %v618
          %v652 = vmul.f32 %v596, %v623
          %v653 = vmul.f32 %v597, %v608
          %v654 = vmul.f32 %v598, %v613
          %v655 = vmul.f32 %v599, %v618
          %v656 = vmul.f32 %v600, %v623
          %v657 = vadd.f32 %v625, %v626
          %v658 = vadd.f32 %v657, %v627
          %v659 = vadd.f32 %v658, %v628
          %v660 = vrot.slane %v659, 4
          %v661 = vadd.f32 %v659, %v660
          %v662 = vrot.slane %v661, 2
          %v663 = vadd.f32 %v661, %v662
          %v664 = vrot.slane %v663, 1
          %v665 = vadd.f32 %v663, %v664
          %v666 = vadd.f32 %v629, %v630
          %v667 = vadd.f32 %v666, %v631
          %v668 = vadd.f32 %v667, %v632
          %v669 = vrot.slane %v668, 4
          %v670 = vadd.f32 %v668, %v669
          %v671 = vrot.slane %v670, 2
          %v672 = vadd.f32 %v670, %v671
          %v673 = vrot.slane %v672, 1
          %v674 = vadd.f32 %v672, %v673
          %v675 = vadd.f32 %v633, %v634
          %v676 = vadd.f32 %v675, %v635
          %v677 = vadd.f32 %v676, %v636
          %v678 = vrot.slane %v677, 4
          %v679 = vadd.f32 %v677, %v678
          %v680 = vrot.slane %v679, 2
          %v681 = vadd.f32 %v679, %v680
          %v682 = vrot.slane %v681, 1
          %v683 = vadd.f32 %v681, %v682
          %v684 = vadd.f32 %v637, %v638
          %v685 = vadd.f32 %v684, %v639
          %v686 = vadd.f32 %v685, %v640
          %v687 = vrot.slane %v686, 4
          %v688 = vadd.f32 %v686, %v687
          %v689 = vrot.slane %v688, 2
          %v690 = vadd.f32 %v688, %v689
          %v691 = vrot.slane %v690, 1
          %v692 = vadd.f32 %v690, %v691
          %v693 = vadd.f32 %v641, %v642
          %v694 = vadd.f32 %v693, %v643
          %v695 = vadd.f32 %v694, %v644
          %v696 = vrot.slane %v695, 4
          %v697 = vadd.f32 %v695, %v696
          %v698 = vrot.slane %v697, 2
          %v699 = vadd.f32 %v697, %v698
          %v700 = vrot.slane %v699, 1
          %v701 = vadd.f32 %v699, %v700
          %v702 = vadd.f32 %v645, %v646
          %v703 = vadd.f32 %v702, %v647
          %v704 = vadd.f32 %v703, %v648
          %v705 = vrot.slane %v704, 4
          %v706 = vadd.f32 %v704, %v705
          %v707 = vrot.slane %v706, 2
          %v708 = vadd.f32 %v706, %v707
          %v709 = vrot.slane %v708, 1
          %v710 = vadd.f32 %v708, %v709
          %v711 = vadd.f32 %v649, %v650
          %v712 = vadd.f32 %v711, %v651
          %v713 = vadd.f32 %v712, %v652
          %v714 = vrot.slane %v713, 4
          %v715 = vadd.f32 %v713, %v714
          %v716 = vrot.slane %v715, 2
          %v717 = vadd.f32 %v715, %v716
          %v718 = vrot.slane %v717, 1
          %v719 = vadd.f32 %v717, %v718
          %v720 = vadd.f32 %v653, %v654
          %v721 = vadd.f32 %v720, %v655
          %v722 = vadd.f32 %v721, %v656
          %v723 = vrot.slane %v722, 4
          %v724 = vadd.f32 %v722, %v723
          %v725 = vrot.slane %v724, 2
          %v726 = vadd.f32 %v724, %v725
          %v727 = vrot.slane %v726, 1
          %v728 = vadd.f32 %v726, %v727
          %v729 = vlaneseq
          %v730 = vand.u32 %v729, 127
          %v731 = vstv %s335
          %v732 = vadd.s32 %v731, %v730
          %v733 = vld [vmem:[%s302] sm:$0xff]
          %734 = vset.pattern.permute.xlu0 0
          %735 = vperm.xlu0 %734, %v733
          %v736 = vpop.permute.xlu0 %735
          %vm737 = vcmp.lt.s32.totalorder %v732, %v736
          %vm746 = vcmask 1041409
          %v747 = vsel %vm746, %v674, %v665
          %vm748 = vcmask 1042434
          %v749 = vsel %vm748, %v683, %v747
          %vm750 = vcmask 1043459
          %v751 = vsel %vm750, %v692, %v749
          %vm752 = vcmask 1044484
          %v753 = vsel %vm752, %v701, %v751
          %vm754 = vcmask 1045509
          %v755 = vsel %vm754, %v710, %v753
          %vm756 = vcmask 1046534
          %v757 = vsel %vm756, %v719, %v755
          %vm758 = vcmask 1047559
          %v759 = vsel %vm758, %v728, %v757
          %v761 = vsel %vm737, %v759, -1e+20
          %vm762 = vcmp.lt.s32.totalorder %v732, 10
          %v763 = vsel %vm762, %v761, -3e+38
          %v764 = vld [vmem:[#allocation2] sm:$0xff]
          %765 = vmax.xlane.f32.xlu0 %v763
          %v766 = vpop.xlane.xlu0 %765
          %v767 = vmax.f32 %v764, %v766
          %v768 = vsub.f32 %v764, %v767
          %v769 = vmul.f32 %v768, 1.442695
          %v770 = vpow.pop %v769
          %772 = vset.pattern.permute.xlu0 0
          %773 = vperm.xlu0 %772, %v767
          %v774 = vpop.permute.xlu0 %773
          %v776 = vsub.f32 %v763, %v774
          %v777 = vmul.f32 %v776, 1.442695
          %v778 = vpow.pop %v777
          %v779 = vld [vmem:[#allocation3] sm:$0xff]
          %v780 = vmul.f32 %v770, %v779
          %781 = vadd.xlane.f32.xlu0 %v778
          %v782 = vpop.xlane.xlu0 %781
          %v783 = vadd.f32 %v780, %v782
          %vm784 = vcmask 7168
          %785 = vst.msk [vmem:[#allocation3] sm:$0xff] %vm784, %v783
          %v786 = vld [vmem:[#allocation4] sm:$0xff]
          %788 = vset.pattern.permute.xlu0 0
          %789 = vperm.xlu0 %788, %v770
          %v790 = vpop.permute.xlu0 %789
          %v792 = vmul.f32 %v790, %v786
          %v793 = vpack.c.bf16 %v778, %v778
          %v794 = vld [vmem:[%s324] sm:$0xf]
          %v795 = vld [vmem:[%s324 + $0x4] sm:$0xf]
          %v796 = vld [vmem:[%s324 + $0x8] sm:$0xf]
          %v797 = vld [vmem:[%s324 + $0xc] sm:$0xf]
          %v798 = vld [vmem:[%s324 + $0x10] sm:$0xf]
          %v799 = vld [vmem:[%s324 + $0x14] sm:$0xf]
          %v800 = vld [vmem:[%s324 + $0x18] sm:$0xf]
          %v801 = vld [vmem:[%s324 + $0x1c] sm:$0xf]
          %v802 = vld [vmem:[%s324 + $0x20] sm:$0xf]
          %v803 = vld [vmem:[%s324 + $0x24] sm:$0xf]
          %v804 = vld [vmem:[%s324 + $0x28] sm:$0xf]
          %v805 = vld [vmem:[%s324 + $0x2c] sm:$0xf]
          %v806 = vld [vmem:[%s324 + $0x30] sm:$0xf]
          %v807 = vld [vmem:[%s324 + $0x34] sm:$0xf]
          %v808 = vld [vmem:[%s324 + $0x38] sm:$0xf]
          %v809 = vld [vmem:[%s324 + $0x3c] sm:$0xf]
          %v826 = vunpack.c.l.b16 %v794
          %v827 = vunpack.c.l.b16 %v795
          %v828 = vunpack.c.l.b16 %v796
          %v829 = vunpack.c.l.b16 %v797
          %v830 = vunpack.c.l.b16 %v798
          %v831 = vunpack.c.l.b16 %v799
          %v832 = vunpack.c.l.b16 %v800
          %v833 = vunpack.c.l.b16 %v801
          %v834 = vunpack.c.l.b16 %v802
          %v835 = vunpack.c.l.b16 %v803
          %v836 = vunpack.c.l.b16 %v804
          %v837 = vunpack.c.l.b16 %v805
          %v838 = vunpack.c.l.b16 %v806
          %v839 = vunpack.c.l.b16 %v807
          %v840 = vunpack.c.l.b16 %v808
          %v841 = vunpack.c.l.b16 %v809
          %v842 = vpack.c.b16 %v827, %v826
          %v843 = vpack.c.b16 %v829, %v828
          %v844 = vpack.c.b16 %v831, %v830
          %v845 = vpack.c.b16 %v833, %v832
          %v846 = vpack.c.b16 %v835, %v834
          %v847 = vpack.c.b16 %v837, %v836
          %v848 = vpack.c.b16 %v839, %v838
          %v849 = vpack.c.b16 %v841, %v840
          %858 = vmatprep.subr.bf16.mxu0 0
          %859 = vmatpush1.bf16.msra.mxu0 %v842
          %860 = vmatprep.subr.bf16.mxu0 0
          %861 = vmatpush1.bf16.msra.mxu0 %v843
          %862 = vmatprep.subr.bf16.mxu0 0
          %863 = vmatpush1.bf16.msra.mxu0 %v844
          %864 = vmatprep.subr.bf16.mxu0 0
          %865 = vmatpush1.bf16.msra.mxu0 %v845
          %866 = vmatprep.subr.bf16.mxu0 0
          %867 = vmatpush1.bf16.msra.mxu0 %v846
          %868 = vmatprep.subr.bf16.mxu0 0
          %869 = vmatpush1.bf16.msra.mxu0 %v847
          %870 = vmatprep.subr.bf16.mxu0 0
          %871 = vmatpush1.bf16.msra.mxu0 %v848
          %872 = vmatprep.subr.bf16.mxu0 0
          %873 = vmatpush1.bf16.msra.mxu0 %v849
          %874 = vmatprep.subr.bf16.mxu0 0
          %875 = vmatpush1.bf16.msra.mxu0 0
          %876 = vmatprep.subr.bf16.mxu0 0
          %877 = vmatpush1.bf16.msra.mxu0 0
          %878 = vmatprep.subr.bf16.mxu0 0
          %879 = vmatpush1.bf16.msra.mxu0 0
          %880 = vmatprep.subr.bf16.mxu0 0
          %881 = vmatpush1.bf16.msra.mxu0 0
          %882 = vmatprep.subr.bf16.mxu0 0
          %883 = vmatpush1.bf16.msra.mxu0 0
          %884 = vmatprep.subr.bf16.mxu0 0
          %885 = vmatpush1.bf16.msra.mxu0 0
          %886 = vmatprep.subr.bf16.mxu0 0
          %887 = vmatpush1.bf16.msra.mxu0 0
          %888 = vmatprep.subr.bf16.mxu0 0
          %889 = vmatpush1.bf16.msra.mxu0 0
          %890 = vmatprep.mubr.bf16.mxu0 0
          %891 = vmatmul.mubr.bf16.gmra.mrb[0].mxu0 %v793
          %v892 = vpop.f32.mrb[0].mxu0
          %v893 = vadd.f32 0.0, %v892
          %v894 = vpop.f32.mrb[0].mxu0
          %v895 = vpop.f32.mrb[0].mxu0
          %v896 = vpop.f32.mrb[0].mxu0
          %897 = vdwg.mxu0
          %v898 = vadd.f32 %v792, %v893
          %899 = vst [vmem:[#allocation4] sm:$0xff] %v898
          %900 = vst.msk [vmem:[#allocation2] sm:$0xff] %vm784, %v767
        $region48: #{tpu_custom_call.1} parent=39 // pred_fallthru
          _
        // Predicated region
        $region49: #{tpu_custom_call.1} parent=39 // pred_check
          %p901 = pneg %p327
        $region50: #{tpu_custom_call.1} parent=39 // pred_check_branch
          %903 = sbr.rel (%p901) target = $region52
        $region51: #{tpu_custom_call.1} parent=39 // pred_region
          %v904 = vld [vmem:[#allocation3] sm:$0xff]
          %v905 = vrcp.pop %v904
          %v906 = vld [vmem:[#allocation4] sm:$0xff]
          %908 = vset.pattern.permute.xlu0 0
          %909 = vperm.xlu0 %908, %v905
          %v910 = vpop.permute.xlu0 %909
          %v912 = vmul.f32 %v906, %v910
          %913 = vst [vmem:[%s298] sm:$0xff] %v912
        $region52: #{tpu_custom_call.1} parent=39 // pred_fallthru
          _
        %s914 = sand.u32 %s175, 1
        %s915 = scalar_lea.sflag [#allocation8], %s914
        %s916 = sand.u32 %s175, 1
        %s917 = smul.addr %s916, 8
        %s918 = scalar_lea.vmem [#allocation7], %s917
        // Predicated region
        $region53: #{tpu_custom_call.1} parent=39 // pred_check
          %p919 = pneg %p185
        $region54: #{tpu_custom_call.1} parent=39 // pred_check_branch
          %921 = sbr.rel (%p919) target = $region56
        $region55: #{tpu_custom_call.1} parent=39 // pred_region
          %s923 = ssub.s32 128, 128
          %924 = vsyncadd %s915, %s923
          %s925 = smul.addr %s30, 128
          %s926 = scalar_lea.hbm %s6, %s925
          %s928 = sshll.u32 %s918, 4
          %s929 = int_to_ptr.vmem [resolvable:$true] %s928
          %931 = dma.vmem_to_hbm [thread:$0]  %s929, 128, %s926, %s915
        $region56: #{tpu_custom_call.1} parent=39 // pred_fallthru
          _
      $region40: #{tpu_custom_call.1} parent=5 // pred_fallthru
        _
      %p932 = scmp.le.s32.totalorder 2, %s21
      // Predicated region
      $region57: #{tpu_custom_call.1} parent=5 // pred_check
        %p933 = pneg %p932
      $region58: #{tpu_custom_call.1} parent=5 // pred_check_branch
        %935 = sbr.rel (%p933) target = $region60
      $region59: #{tpu_custom_call.1} parent=5 // pred_region
        %s936 = ssub.s32 %s21, 2
        // Predicated region
        $region61: #{tpu_custom_call.1} parent=59 // pred_check
          %p937 = pneg %p191
        $region62: #{tpu_custom_call.1} parent=59 // pred_check_branch
          %939 = sbr.rel (%p937) target = $region64
        $region63: #{tpu_custom_call.1} parent=59 // pred_region
          %s940 = sand.u32 %s176, 1
          %s941 = scalar_lea.sflag [#allocation8], %s940
          %s942 = sand.u32 %s176, 1
          %s943 = smul.addr %s942, 8
          %s944 = scalar_lea.vmem [#allocation7], %s943
          %945 = dma.done %s941, 128
        $region64: #{tpu_custom_call.1} parent=59 // pred_fallthru
          _
      $region60: #{tpu_custom_call.1} parent=5 // pred_fallthru
        _
    $region6: #{tpu_custom_call.1} parent=1 // loop_footer
      %s25 = sadd.s32 1, %s21
    $region7: #{tpu_custom_call.1} parent=1 // loop_footer_branch
      %20 = sbr.rel target = $region3
    $region8: #{tpu_custom_call.1} parent=1 // loop_exit
      _
    %946 = vsyncpa [#allocation8], 1
    %s947 = scalar_lea.sflag [#allocation8], 1
    %948 = vsyncpa %s947, 1

</llo_original>
